<compile_context>
chip_gen: v7x
topology: tpu7x:2x2x1
jax: 0.10.0
libtpu: 0.0.40
codegen_flags: <defaults>
</compile_context>

<pallas_src>
import functools

import jax
import jax.numpy as jnp
from jax.experimental import pallas as pl
from jax.experimental.pallas import tpu as pltpu

_BN_EPS = 1e-5


def _pool_conv_stats_kernel(xp_ref, w_ref, mask_ref,
                            conv_ref, sum_ref, sumsq_ref,
                            pool_ref, patches_ref, *, wq):
    """Per-image: maxpool(2) + conv3x3 (single im2col matmul) + BN partial stats.

    xp_ref      : (1, 4, Cin, Lf) f32  four 2x2-window phases, zero-halo, width-flattened
    w_ref       : (Cout, 9*Cin)   bf16 conv weight, tap-major along K
    mask_ref    : (1, Lout)       f32  1.0 on valid output columns, 0.0 on junk halo columns
    conv_ref    : (1, Cout, Lout) f32  conv output (pre-BN), flat padded-width layout
    sum_ref     : (1, Cout, 1)    f32  per-image sum over valid columns
    sumsq_ref   : (1, Cout, 1)    f32  per-image sum of squares over valid columns
    pool_ref    : (Cin, Lf)       bf16 VMEM scratch (pooled, padded, flattened image)
    patches_ref : (9*Cin, Lout)   bf16 VMEM scratch (im2col, built once)
    """
    cin = xp_ref.shape[2]
    lout = conv_ref.shape[2]

    # ---- MaxPool2d(2): elementwise max over the four 2x2-window phases (VPU, f32) ----
    pooled = jnp.max(xp_ref[0], axis=0)                   # (Cin, Lf) f32
    pool_ref[...] = pooled.astype(jnp.bfloat16)           # bf16 only for the MXU operand

    # ---- im2col built once: 9 lane-shifted contiguous slices of the flat padded image ----
    for kh in range(3):
        for kw in range(3):
            k = kh * 3 + kw
            d = kh * wq + kw
            patches_ref[k * cin:(k + 1) * cin, :] = pool_ref[:, d:d + lout]

    # ---- single MXU matmul, K = 9*Cin, f32 accumulation ----
    acc = jnp.dot(w_ref[...], patches_ref[...],
                  preferred_element_type=jnp.float32)     # (Cout, Lout) f32
    conv_ref[0] = acc

    # ---- BatchNorm partial statistics (valid columns only; junk halo columns masked) ----
    masked = acc * mask_ref[...]                          # (Cout, Lout)
    sum_ref[0] = jnp.sum(masked, axis=1, keepdims=True)   # (Cout, 1)
    sumsq_ref[0] = jnp.sum(masked * acc, axis=1, keepdims=True)


def _bn_relu_kernel(conv_ref, scale_ref, shift_ref, o_ref):
    """Per-image: y = relu(conv * scale + shift), lane-dense layout."""
    y = conv_ref[0] * scale_ref[...] + shift_ref[...]     # (Cout, Lout)
    o_ref[0] = jnp.maximum(y, 0.0)


@jax.jit
def down_single_conv(x_nchw, weight_oihw, gamma, beta):
    """Forward pass of DownSingleConv. x_nchw: (N, Cin, H, W) float32 -> (N, Cout, H//2, W//2)."""
    N, Cin, H, W = x_nchw.shape
    Cout = weight_oihw.shape[0]
    Hp, Wp = H // 2, W // 2          # MaxPool2d(2) floors odd sizes
    Wq = Wp + 2                      # width incl. conv halo
    Lout = Hp * Wq                   # flat output columns per image (incl. 2 junk cols/row)
    Lf = (Hp + 2) * Wq + 2           # flat padded image length (+2 for the last-tap overrun)

    # ---------- wrapper-side layout glue (stride-2 de-interleave + zero halo + flatten) ----------
    x = x_nchw[:, :, :2 * Hp, :2 * Wp].astype(jnp.float32)
    xp = x.reshape(N, Cin, Hp, 2, Wp, 2).transpose(0, 3, 5, 1, 2, 4)   # (N,2,2,Cin,Hp,Wp)
    xp = xp.reshape(N, 4, Cin, Hp, Wp)
    xp = jnp.pad(xp, ((0, 0), (0, 0), (0, 0), (1, 1), (1, 1)))          # conv zero halo
    xp = xp.reshape(N, 4, Cin, (Hp + 2) * Wq)
    xp = jnp.pad(xp, ((0, 0), (0, 0), (0, 0), (0, 2)))                  # (N,4,Cin,Lf)

    # conv weight: (Cout, Cin, 3, 3) -> (Cout, 9*Cin), K index = (kh*3+kw)*Cin + ci, bf16 for MXU
    w2 = jnp.transpose(weight_oihw, (0, 2, 3, 1)).reshape(Cout, 9 * Cin).astype(jnp.bfloat16)

    # valid-column mask for the BN statistics (junk columns are w in {Wp, Wp+1} of each row)
    mask = (jnp.arange(Lout) % Wq < Wp).astype(jnp.float32).reshape(1, Lout)

    kernel_a = functools.partial(_pool_conv_stats_kernel, wq=Wq)
    compiler_params = pltpu.CompilerParams(
        dimension_semantics=("parallel",),
        vmem_limit_bytes=32 * 1024 * 1024,
    )

    # ---------- pass 1: pool + conv + per-image BN statistics ----------
    conv_flat, psum, psumsq = pl.pallas_call(
        kernel_a,
        grid=(N,),
        in_specs=[
            pl.BlockSpec((1, 4, Cin, Lf), lambda n: (n, 0, 0, 0)),
            pl.BlockSpec((Cout, 9 * Cin), lambda n: (0, 0)),
            pl.BlockSpec((1, Lout), lambda n: (0, 0)),
        ],
        out_specs=[
            pl.BlockSpec((1, Cout, Lout), lambda n: (n, 0, 0)),
            pl.BlockSpec((1, Cout, 1), lambda n: (n, 0, 0)),
            pl.BlockSpec((1, Cout, 1), lambda n: (n, 0, 0)),
        ],
        out_shape=[
            jax.ShapeDtypeStruct((N, Cout, Lout), jnp.float32),
            jax.ShapeDtypeStruct((N, Cout, 1), jnp.float32),
            jax.ShapeDtypeStruct((N, Cout, 1), jnp.float32),
        ],
        scratch_shapes=[
            pltpu.VMEM((Cin, Lf), jnp.bfloat16),
            pltpu.VMEM((9 * Cin, Lout), jnp.bfloat16),
        ],
        compiler_params=compiler_params,
    )(xp, w2, mask)

    # ---------- tiny global BN reduction (training-mode batch stats, biased variance) ----------
    count = jnp.float32(N * Hp * Wp)
    total = jnp.sum(psum[:, :, 0], axis=0)                 # (Cout,)
    total_sq = jnp.sum(psumsq[:, :, 0], axis=0)            # (Cout,)
    mean = total / count
    var = total_sq / count - mean * mean
    inv = jax.lax.rsqrt(var + _BN_EPS)
    g = gamma.astype(jnp.float32)
    b = beta.astype(jnp.float32)
    scale = (g * inv).reshape(Cout, 1)
    shift = (b - mean * g * inv).reshape(Cout, 1)

    # ---------- pass 2: normalize + affine + ReLU ----------
    y_flat = pl.pallas_call(
        _bn_relu_kernel,
        grid=(N,),
        in_specs=[
            pl.BlockSpec((1, Cout, Lout), lambda n: (n, 0, 0)),
            pl.BlockSpec((Cout, 1), lambda n: (0, 0)),
            pl.BlockSpec((Cout, 1), lambda n: (0, 0)),
        ],
        out_specs=pl.BlockSpec((1, Cout, Lout), lambda n: (n, 0, 0)),
        out_shape=jax.ShapeDtypeStruct((N, Cout, Lout), jnp.float32),
        compiler_params=compiler_params,
    )(conv_flat, scale, shift)

    # drop the 2 junk columns per padded row -> output is already NCHW (no transpose)
    return y_flat.reshape(N, Cout, Hp, Wq)[:, :, :, :Wp]


def _reference(x, weight, gamma, beta, cast_bf16=False):
    """Pure-JAX reference matching PyTorch DownSingleConv (training-mode BN)."""
    N, Cin, H, W = x.shape
    Hp, Wp = H // 2, W // 2
    x = x[:, :, :2 * Hp, :2 * Wp]
    p = jnp.max(
        jnp.stack([x[:, :, 0::2, 0::2], x[:, :, 0::2, 1::2],
                   x[:, :, 1::2, 0::2], x[:, :, 1::2, 1::2]]), axis=0)
    w = weight
    if cast_bf16:  # mimic the kernel's bf16 MXU operands for a tight comparison
        p = p.astype(jnp.bfloat16)
        w = w.astype(jnp.bfloat16)
    conv = jax.lax.conv_general_dilated(
        p, w, window_strides=(1, 1), padding='SAME',
        dimension_numbers=('NCHW', 'OIHW', 'NCHW'),
        preferred_element_type=jnp.float32)
    mean = jnp.mean(conv, axis=(0, 2, 3), keepdims=True)
    var = jnp.mean((conv - mean) ** 2, axis=(0, 2, 3), keepdims=True)
    y = (conv - mean) * jax.lax.rsqrt(var + _BN_EPS)
    y = y * gamma.reshape(1, -1, 1, 1) + beta.reshape(1, -1, 1, 1)
    return jnp.maximum(y, 0.0)


if __name__ == "__main__":
    key = jax.random.PRNGKey(0)
    k_x, k_w, k_g, k_b = jax.random.split(key, 4)

    N, Cin, H, W = 2, 4, 16, 16
    Cout = 8

    x = jax.random.normal(k_x, (N, Cin, H, W), dtype=jnp.float32)
    # Conv2d(4, 8, kernel_size=3, padding=1, bias=False) weight
    weight = 0.1 * jax.random.normal(k_w, (Cout, Cin, 3, 3), dtype=jnp.float32)
    # BatchNorm2d(8) affine params (deterministic, non-trivial)
    gamma = 1.0 + 0.1 * jax.random.normal(k_g, (Cout,), dtype=jnp.float32)
    beta = 0.1 * jax.random.normal(k_b, (Cout,), dtype=jnp.float32)

    out = jax.block_until_ready(down_single_conv(x, weight, gamma, beta))
    assert out.shape == (N, Cout, H // 2, W // 2), out.shape

    # Tight check vs a reference that also feeds bf16 operands to the conv.
    ref_bf16 = _reference(x, weight, gamma, beta, cast_bf16=True)
    err_bf16 = float(jnp.max(jnp.abs(out - ref_bf16)))
    assert err_bf16 < 5e-3, err_bf16

    # Sanity check vs the pure-f32 PyTorch-semantics reference (loose tolerance:
    # the kernel intentionally uses bf16 MXU operands per the perf review).
    ref_f32 = _reference(x, weight, gamma, beta, cast_bf16=False)
    err_f32 = float(jnp.max(jnp.abs(out - ref_f32)))
    assert err_f32 < 5e-2, err_f32

    print("KERNEL_OK")
</pallas_src>

<mosaic_0001>
module attributes {stable_mosaic.version = 11 : i64} {
  func.func @_pool_conv_stats_kernel(%arg0: i32, %arg1: memref<1x4x4x102xf32, #tpu.memory_space<vmem>>, %arg2: memref<8x36xbf16, #tpu.memory_space<vmem>>, %arg3: memref<1x80xf32, #tpu.memory_space<vmem>>, %arg4: memref<1x8x80xf32, #tpu.memory_space<vmem>>, %arg5: memref<1x8x1xf32, #tpu.memory_space<vmem>>, %arg6: memref<1x8x1xf32, #tpu.memory_space<vmem>>, %arg7: memref<4x102xbf16, #tpu.memory_space<vmem>>, %arg8: memref<36x80xbf16, #tpu.memory_space<vmem>>) attributes {dimension_semantics = [#tpu.dimension_semantics<parallel>], iteration_bounds = array<i64: 2>, scalar_prefetch = 0 : i64, scratch_operands = 2 : i64, tpu.core_type = #tpu.core_type<tc>, window_params = [{transform_indices = @transform_0, window_bounds = array<i64: 1, 4, 4, 102>}, {pipeline_mode = #tpu.pipeline_mode<synchronous>, transform_indices = @transform_1, window_bounds = array<i64: 8, 36>}, {pipeline_mode = #tpu.pipeline_mode<synchronous>, transform_indices = @transform_2, window_bounds = array<i64: 1, 80>}, {transform_indices = @transform_3, window_bounds = array<i64: 1, 8, 80>}, {transform_indices = @transform_4, window_bounds = array<i64: 1, 8, 1>}, {transform_indices = @transform_5, window_bounds = array<i64: 1, 8, 1>}]} {
    %c0 = arith.constant 0 : index
    %c0_0 = arith.constant 0 : index
    %c0_1 = arith.constant 0 : index
    %c0_2 = arith.constant 0 : index
    %0 = vector.load %arg1[%c0, %c0_0, %c0_1, %c0_2] : memref<1x4x4x102xf32, #tpu.memory_space<vmem>>, vector<1x4x4x102xf32>
    %1 = vector.shape_cast %0 : vector<1x4x4x102xf32> to vector<4x4x102xf32>
    %cst = arith.constant dense<0xFF800000> : vector<4x102xf32>
    %2 = vector.multi_reduction <maximumf>, %1, %cst [0] : vector<4x4x102xf32> to vector<4x102xf32>
    %3 = arith.truncf %2 : vector<4x102xf32> to vector<4x102xbf16>
    %c0_3 = arith.constant 0 : index
    %c0_4 = arith.constant 0 : index
    %4 = vector.load %arg7[%c0_3, %c0_4] : memref<4x102xbf16, #tpu.memory_space<vmem>>, vector<4x102xbf16>
    tpu.vector_store %arg7[%c0_3, %c0_4], %3 {strides = array<i32>} : memref<4x102xbf16, #tpu.memory_space<vmem>>, vector<4x102xbf16>,
    %c0_5 = arith.constant 0 : index
    %c0_6 = arith.constant 0 : index
    %5 = vector.load %arg7[%c0_5, %c0_6] : memref<4x102xbf16, #tpu.memory_space<vmem>>, vector<4x80xbf16>
    %c0_7 = arith.constant 0 : index
    %c0_8 = arith.constant 0 : index
    %6 = vector.load %arg8[%c0_7, %c0_8] : memref<36x80xbf16, #tpu.memory_space<vmem>>, vector<4x80xbf16>
    tpu.vector_store %arg8[%c0_7, %c0_8], %5 {strides = array<i32>} : memref<36x80xbf16, #tpu.memory_space<vmem>>, vector<4x80xbf16>,
    %c0_9 = arith.constant 0 : index
    %c1 = arith.constant 1 : index
    %7 = vector.load %arg7[%c0_9, %c1] : memref<4x102xbf16, #tpu.memory_space<vmem>>, vector<4x80xbf16>
    %c4 = arith.constant 4 : index
    %c0_10 = arith.constant 0 : index
    %8 = vector.load %arg8[%c4, %c0_10] : memref<36x80xbf16, #tpu.memory_space<vmem>>, vector<4x80xbf16>
    tpu.vector_store %arg8[%c4, %c0_10], %7 {strides = array<i32>} : memref<36x80xbf16, #tpu.memory_space<vmem>>, vector<4x80xbf16>,
    %c0_11 = arith.constant 0 : index
    %c2 = arith.constant 2 : index
    %9 = vector.load %arg7[%c0_11, %c2] : memref<4x102xbf16, #tpu.memory_space<vmem>>, vector<4x80xbf16>
    %c8 = arith.constant 8 : index
    %c0_12 = arith.constant 0 : index
    %10 = vector.load %arg8[%c8, %c0_12] : memref<36x80xbf16, #tpu.memory_space<vmem>>, vector<4x80xbf16>
    tpu.vector_store %arg8[%c8, %c0_12], %9 {strides = array<i32>} : memref<36x80xbf16, #tpu.memory_space<vmem>>, vector<4x80xbf16>,
    %c0_13 = arith.constant 0 : index
    %c10 = arith.constant 10 : index
    %11 = vector.load %arg7[%c0_13, %c10] : memref<4x102xbf16, #tpu.memory_space<vmem>>, vector<4x80xbf16>
    %c12 = arith.constant 12 : index
    %c0_14 = arith.constant 0 : index
    %12 = vector.load %arg8[%c12, %c0_14] : memref<36x80xbf16, #tpu.memory_space<vmem>>, vector<4x80xbf16>
    tpu.vector_store %arg8[%c12, %c0_14], %11 {strides = array<i32>} : memref<36x80xbf16, #tpu.memory_space<vmem>>, vector<4x80xbf16>,
    %c0_15 = arith.constant 0 : index
    %c11 = arith.constant 11 : index
    %13 = vector.load %arg7[%c0_15, %c11] : memref<4x102xbf16, #tpu.memory_space<vmem>>, vector<4x80xbf16>
    %c16 = arith.constant 16 : index
    %c0_16 = arith.constant 0 : index
    %14 = vector.load %arg8[%c16, %c0_16] : memref<36x80xbf16, #tpu.memory_space<vmem>>, vector<4x80xbf16>
    tpu.vector_store %arg8[%c16, %c0_16], %13 {strides = array<i32>} : memref<36x80xbf16, #tpu.memory_space<vmem>>, vector<4x80xbf16>,
    %c0_17 = arith.constant 0 : index
    %c12_18 = arith.constant 12 : index
    %15 = vector.load %arg7[%c0_17, %c12_18] : memref<4x102xbf16, #tpu.memory_space<vmem>>, vector<4x80xbf16>
    %c20 = arith.constant 20 : index
    %c0_19 = arith.constant 0 : index
    %16 = vector.load %arg8[%c20, %c0_19] : memref<36x80xbf16, #tpu.memory_space<vmem>>, vector<4x80xbf16>
    tpu.vector_store %arg8[%c20, %c0_19], %15 {strides = array<i32>} : memref<36x80xbf16, #tpu.memory_space<vmem>>, vector<4x80xbf16>,
    %c0_20 = arith.constant 0 : index
    %c20_21 = arith.constant 20 : index
    %17 = vector.load %arg7[%c0_20, %c20_21] : memref<4x102xbf16, #tpu.memory_space<vmem>>, vector<4x80xbf16>
    %c24 = arith.constant 24 : index
    %c0_22 = arith.constant 0 : index
    %18 = vector.load %arg8[%c24, %c0_22] : memref<36x80xbf16, #tpu.memory_space<vmem>>, vector<4x80xbf16>
    tpu.vector_store %arg8[%c24, %c0_22], %17 {strides = array<i32>} : memref<36x80xbf16, #tpu.memory_space<vmem>>, vector<4x80xbf16>,
    %c0_23 = arith.constant 0 : index
    %c21 = arith.constant 21 : index
    %19 = vector.load %arg7[%c0_23, %c21] : memref<4x102xbf16, #tpu.memory_space<vmem>>, vector<4x80xbf16>
    %c28 = arith.constant 28 : index
    %c0_24 = arith.constant 0 : index
    %20 = vector.load %arg8[%c28, %c0_24] : memref<36x80xbf16, #tpu.memory_space<vmem>>, vector<4x80xbf16>
    tpu.vector_store %arg8[%c28, %c0_24], %19 {strides = array<i32>} : memref<36x80xbf16, #tpu.memory_space<vmem>>, vector<4x80xbf16>,
    %c0_25 = arith.constant 0 : index
    %c22 = arith.constant 22 : index
    %21 = vector.load %arg7[%c0_25, %c22] : memref<4x102xbf16, #tpu.memory_space<vmem>>, vector<4x80xbf16>
    %c32 = arith.constant 32 : index
    %c0_26 = arith.constant 0 : index
    %22 = vector.load %arg8[%c32, %c0_26] : memref<36x80xbf16, #tpu.memory_space<vmem>>, vector<4x80xbf16>
    tpu.vector_store %arg8[%c32, %c0_26], %21 {strides = array<i32>} : memref<36x80xbf16, #tpu.memory_space<vmem>>, vector<4x80xbf16>,
    %c0_27 = arith.constant 0 : index
    %c0_28 = arith.constant 0 : index
    %23 = vector.load %arg2[%c0_27, %c0_28] : memref<8x36xbf16, #tpu.memory_space<vmem>>, vector<8x36xbf16>
    %c0_29 = arith.constant 0 : index
    %c0_30 = arith.constant 0 : index
    %24 = vector.load %arg8[%c0_29, %c0_30] : memref<36x80xbf16, #tpu.memory_space<vmem>>, vector<36x80xbf16>
    %cst_31 = arith.constant dense<0.000000e+00> : vector<8x80xf32>
    %25 = tpu.matmul %23, %24, %cst_31 {dimension_numbers = #tpu.dot_dimension_numbers<[1], [0], [0], [1], [0, 0, 1, 1], [], []>} : vector<8x36xbf16>, vector<36x80xbf16>, vector<8x80xf32> -> vector<8x80xf32>
    %c0_32 = arith.constant 0 : index
    %c0_33 = arith.constant 0 : index
    %c0_34 = arith.constant 0 : index
    %26 = vector.load %arg4[%c0_32, %c0_33, %c0_34] : memref<1x8x80xf32, #tpu.memory_space<vmem>>, vector<1x8x80xf32>
    %27 = vector.shape_cast %26 : vector<1x8x80xf32> to vector<8x80xf32>
    %28 = vector.shape_cast %25 : vector<8x80xf32> to vector<1x8x80xf32>
    tpu.vector_store %arg4[%c0_32, %c0_33, %c0_34], %28 {strides = array<i32>} : memref<1x8x80xf32, #tpu.memory_space<vmem>>, vector<1x8x80xf32>,
    %c0_35 = arith.constant 0 : index
    %c0_36 = arith.constant 0 : index
    %29 = vector.load %arg3[%c0_35, %c0_36] : memref<1x80xf32, #tpu.memory_space<vmem>>, vector<1x80xf32>
    %30 = vector.broadcast %29 : vector<1x80xf32> to vector<8x80xf32>
    %31 = arith.mulf %25, %30 : vector<8x80xf32>
    %cst_37 = arith.constant dense<0.000000e+00> : vector<8xf32>
    %32 = vector.multi_reduction <add>, %31, %cst_37 [1] : vector<8x80xf32> to vector<8xf32>
    %33 = vector.shape_cast %32 : vector<8xf32> to vector<8x1xf32>
    %c0_38 = arith.constant 0 : index
    %c0_39 = arith.constant 0 : index
    %c0_40 = arith.constant 0 : index
    %34 = vector.load %arg5[%c0_38, %c0_39, %c0_40] : memref<1x8x1xf32, #tpu.memory_space<vmem>>, vector<1x8x1xf32>
    %35 = vector.shape_cast %34 : vector<1x8x1xf32> to vector<8x1xf32>
    %36 = vector.shape_cast %33 : vector<8x1xf32> to vector<1x8x1xf32>
    tpu.vector_store %arg5[%c0_38, %c0_39, %c0_40], %36 {strides = array<i32>} : memref<1x8x1xf32, #tpu.memory_space<vmem>>, vector<1x8x1xf32>,
    %37 = arith.mulf %31, %25 : vector<8x80xf32>
    %cst_41 = arith.constant dense<0.000000e+00> : vector<8xf32>
    %38 = vector.multi_reduction <add>, %37, %cst_41 [1] : vector<8x80xf32> to vector<8xf32>
    %39 = vector.shape_cast %38 : vector<8xf32> to vector<8x1xf32>
    %c0_42 = arith.constant 0 : index
    %c0_43 = arith.constant 0 : index
    %c0_44 = arith.constant 0 : index
    %40 = vector.load %arg6[%c0_42, %c0_43, %c0_44] : memref<1x8x1xf32, #tpu.memory_space<vmem>>, vector<1x8x1xf32>
    %41 = vector.shape_cast %40 : vector<1x8x1xf32> to vector<8x1xf32>
    %42 = vector.shape_cast %39 : vector<8x1xf32> to vector<1x8x1xf32>
    tpu.vector_store %arg6[%c0_42, %c0_43, %c0_44], %42 {strides = array<i32>} : memref<1x8x1xf32, #tpu.memory_space<vmem>>, vector<1x8x1xf32>,
    return
  }
  func.func @transform_0(%arg0: i32) -> (i32, i32, i32, i32) {
    %c0_i32 = arith.constant 0 : i32
    %c0_i32_0 = arith.constant 0 : i32
    %c0_i32_1 = arith.constant 0 : i32
    %c0_i32_2 = arith.constant 0 : i32
    return %arg0, %c0_i32, %c0_i32_0, %c0_i32_1 : i32, i32, i32, i32
  }
  func.func @transform_1(%arg0: i32) -> (i32, i32) {
    %c0_i32 = arith.constant 0 : i32
    %c0_i32_0 = arith.constant 0 : i32
    %c0_i32_1 = arith.constant 0 : i32
    return %c0_i32, %c0_i32_0 : i32, i32
  }
  func.func @transform_2(%arg0: i32) -> (i32, i32) {
    %c0_i32 = arith.constant 0 : i32
    %c0_i32_0 = arith.constant 0 : i32
    %c0_i32_1 = arith.constant 0 : i32
    return %c0_i32, %c0_i32_0 : i32, i32
  }
  func.func @transform_3(%arg0: i32) -> (i32, i32, i32) {
    %c0_i32 = arith.constant 0 : i32
    %c0_i32_0 = arith.constant 0 : i32
    %c0_i32_1 = arith.constant 0 : i32
    return %arg0, %c0_i32, %c0_i32_0 : i32, i32, i32
  }
  func.func @transform_4(%arg0: i32) -> (i32, i32, i32) {
    %c0_i32 = arith.constant 0 : i32
    %c0_i32_0 = arith.constant 0 : i32
    %c0_i32_1 = arith.constant 0 : i32
    return %arg0, %c0_i32, %c0_i32_0 : i32, i32, i32
  }
  func.func @transform_5(%arg0: i32) -> (i32, i32, i32) {
    %c0_i32 = arith.constant 0 : i32
    %c0_i32_0 = arith.constant 0 : i32
    %c0_i32_1 = arith.constant 0 : i32
    return %arg0, %c0_i32, %c0_i32_0 : i32, i32, i32
  }
}

module attributes {stable_mosaic.version = 11 : i64} {
  func.func @_bn_relu_kernel(%arg0: i32, %arg1: memref<1x8x80xf32, #tpu.memory_space<vmem>>, %arg2: memref<8x1xf32, #tpu.memory_space<vmem>>, %arg3: memref<8x1xf32, #tpu.memory_space<vmem>>, %arg4: memref<1x8x80xf32, #tpu.memory_space<vmem>>) attributes {dimension_semantics = [#tpu.dimension_semantics<parallel>], iteration_bounds = array<i64: 2>, scalar_prefetch = 0 : i64, scratch_operands = 0 : i64, tpu.core_type = #tpu.core_type<tc>, window_params = [{transform_indices = @transform_0, window_bounds = array<i64: 1, 8, 80>}, {pipeline_mode = #tpu.pipeline_mode<synchronous>, transform_indices = @transform_1, window_bounds = array<i64: 8, 1>}, {pipeline_mode = #tpu.pipeline_mode<synchronous>, transform_indices = @transform_2, window_bounds = array<i64: 8, 1>}, {transform_indices = @transform_3, window_bounds = array<i64: 1, 8, 80>}]} {
    %c0 = arith.constant 0 : index
    %c0_0 = arith.constant 0 : index
    %c0_1 = arith.constant 0 : index
    %0 = vector.load %arg1[%c0, %c0_0, %c0_1] : memref<1x8x80xf32, #tpu.memory_space<vmem>>, vector<1x8x80xf32>
    %1 = vector.shape_cast %0 : vector<1x8x80xf32> to vector<8x80xf32>
    %c0_2 = arith.constant 0 : index
    %c0_3 = arith.constant 0 : index
    %2 = vector.load %arg2[%c0_2, %c0_3] : memref<8x1xf32, #tpu.memory_space<vmem>>, vector<8x1xf32>
    %3 = vector.broadcast %2 : vector<8x1xf32> to vector<8x80xf32>
    %4 = arith.mulf %1, %3 : vector<8x80xf32>
    %c0_4 = arith.constant 0 : index
    %c0_5 = arith.constant 0 : index
    %5 = vector.load %arg3[%c0_4, %c0_5] : memref<8x1xf32, #tpu.memory_space<vmem>>, vector<8x1xf32>
    %6 = vector.broadcast %5 : vector<8x1xf32> to vector<8x80xf32>
    %7 = arith.addf %4, %6 : vector<8x80xf32>
    %cst = arith.constant 0.000000e+00 : f32
    %8 = vector.broadcast %cst : f32 to vector<8x80xf32>
    %9 = arith.maximumf %7, %8 : vector<8x80xf32>
    %c0_6 = arith.constant 0 : index
    %c0_7 = arith.constant 0 : index
    %c0_8 = arith.constant 0 : index
    %10 = vector.load %arg4[%c0_6, %c0_7, %c0_8] : memref<1x8x80xf32, #tpu.memory_space<vmem>>, vector<1x8x80xf32>
    %11 = vector.shape_cast %10 : vector<1x8x80xf32> to vector<8x80xf32>
    %12 = vector.shape_cast %9 : vector<8x80xf32> to vector<1x8x80xf32>
    tpu.vector_store %arg4[%c0_6, %c0_7, %c0_8], %12 {strides = array<i32>} : memref<1x8x80xf32, #tpu.memory_space<vmem>>, vector<1x8x80xf32>,
    return
  }
  func.func @transform_0(%arg0: i32) -> (i32, i32, i32) {
    %c0_i32 = arith.constant 0 : i32
    %c0_i32_0 = arith.constant 0 : i32
    %c0_i32_1 = arith.constant 0 : i32
    return %arg0, %c0_i32, %c0_i32_0 : i32, i32, i32
  }
  func.func @transform_1(%arg0: i32) -> (i32, i32) {
    %c0_i32 = arith.constant 0 : i32
    %c0_i32_0 = arith.constant 0 : i32
    %c0_i32_1 = arith.constant 0 : i32
    return %c0_i32, %c0_i32_0 : i32, i32
  }
  func.func @transform_2(%arg0: i32) -> (i32, i32) {
    %c0_i32 = arith.constant 0 : i32
    %c0_i32_0 = arith.constant 0 : i32
    %c0_i32_1 = arith.constant 0 : i32
    return %c0_i32, %c0_i32_0 : i32, i32
  }
  func.func @transform_3(%arg0: i32) -> (i32, i32, i32) {
    %c0_i32 = arith.constant 0 : i32
    %c0_i32_0 = arith.constant 0 : i32
    %c0_i32_1 = arith.constant 0 : i32
    return %arg0, %c0_i32, %c0_i32_0 : i32, i32, i32
  }
}

</mosaic_0001>

<llo_original>
// kernel: down_single_conv.3
$region0: #{down_single_conv.3}
  #allocation0 [shape = 'u32[]', space=smem, size = 0x4, offset = 0x4, fixed_abs, tag = 'smem constant byte address 0x4 - core index']
  #allocation1 [shape = 'u32[144,128]{1,0:T(1,128)}', space=vmem, size = 0x12000, scoped, tag = 'internal scratch']
  %s0 = inlined_call_operand.vmem [shape: f32[2,8,80], index: 0, kind: input, shape index: {}]
  %s1 = inlined_call_operand.vmem [shape: f32[8,1], index: 1, kind: input, shape index: {}]
  %s2 = inlined_call_operand.vmem [shape: f32[8,1], index: 2, kind: input, shape index: {}]
  %s3 = inlined_call_operand.vmem [shape: f32[2,8,80], index: 3, kind: output, shape index: {}]
  %s4 = sld [smem:[#allocation0]]
  $region45: #{down_single_conv.3} parent=0
    _
  %s6 = ssub.s32 1, %s4
  %s7 = scalar_select 0, %s6, %s4
  loop: start=0, step=1, limit=4
  $region2: #{down_single_conv.3} parent=0 // loop_pre_header
    _
  $region3: #{down_single_conv.3} parent=0 // loop_header
    %s9 = sphi 0, %s13
    %p10 = scmp.ge.s32.totalorder %s9, 4
    %s19 = sphi 0, %s21
    %s22 = sphi 0, %s19
    %s23 = sphi 0, %s22
    %s39 = sphi 0, %s23
    %s43 = sphi 0, %s43
    %s45 = sphi 0, %s43
    %s46 = sphi 0, %s45
    %s60 = sphi 0, %s46
    %s64 = sphi 0, %s64
    %s66 = sphi 0, %s64
    %s67 = sphi 0, %s66
    %s81 = sphi 0, %s67
    %s87 = sphi 0, %s89
    %s90 = sphi 0, %s87
    %s91 = sphi 0, %s90
    %s107 = sphi 0, %s91
  $region4: #{down_single_conv.3} parent=0 // loop_header_branch
    %12 = sbr.rel (%p10) target = $region8
  $region5: #{down_single_conv.3} parent=0 // loop_body
    %s14 = ssub.s32 %s9, 1
    %s15 = ssub.s32 %s9, 2
    %s16 = sadd.s32 %s9, 1
    %s17 = ssub.s32 %s9, %s16
    %p18 = scmp.eq.s32.totalorder %s17, 0
    %s20 = sadd.s32 %s19, 1
    %s21 = scalar_select %p18, %s19, %s20
    %p24 = pneg %p18
    %p25 = scmp.eq.s32.totalorder %s9, 1
    %p26 = por %p24, %p25
    %p27 = scmp.ne.s32.totalorder %s19, %s22
    %p28 = scmp.eq.s32.totalorder %s9, 0
    %p29 = por %p27, %p28
    %p30 = scmp.ne.s32.totalorder %s19, %s22
    %p31 = scmp.eq.s32.totalorder %s14, 1
    %p32 = por %p30, %p31
    %p33 = scmp.ne.s32.totalorder %s22, %s23
    %p34 = scmp.eq.s32.totalorder %s14, 0
    %p35 = por %p33, %p34
    %p36 = scmp.ne.s32.totalorder %s22, %s23
    %p37 = scmp.eq.s32.totalorder %s15, 1
    %p38 = por %p36, %p37
    %p40 = scmp.ne.s32.totalorder %s23, %s39
    %p41 = scmp.eq.s32.totalorder %s15, 0
    %p42 = por %p40, %p41
    %s44 = sadd.s32 %s43, 1
    %p47 = scmp.eq.s32.totalorder %s9, 1
    %p48 = scmp.ne.s32.totalorder %s43, %s45
    %p49 = scmp.eq.s32.totalorder %s9, 0
    %p50 = por %p48, %p49
    %p51 = scmp.ne.s32.totalorder %s43, %s45
    %p52 = scmp.eq.s32.totalorder %s14, 1
    %p53 = por %p51, %p52
    %p54 = scmp.ne.s32.totalorder %s45, %s46
    %p55 = scmp.eq.s32.totalorder %s14, 0
    %p56 = por %p54, %p55
    %p57 = scmp.ne.s32.totalorder %s45, %s46
    %p58 = scmp.eq.s32.totalorder %s15, 1
    %p59 = por %p57, %p58
    %p61 = scmp.ne.s32.totalorder %s46, %s60
    %p62 = scmp.eq.s32.totalorder %s15, 0
    %p63 = por %p61, %p62
    %s65 = sadd.s32 %s64, 1
    %p68 = scmp.eq.s32.totalorder %s9, 1
    %p69 = scmp.ne.s32.totalorder %s64, %s66
    %p70 = scmp.eq.s32.totalorder %s9, 0
    %p71 = por %p69, %p70
    %p72 = scmp.ne.s32.totalorder %s64, %s66
    %p73 = scmp.eq.s32.totalorder %s14, 1
    %p74 = por %p72, %p73
    %p75 = scmp.ne.s32.totalorder %s66, %s67
    %p76 = scmp.eq.s32.totalorder %s14, 0
    %p77 = por %p75, %p76
    %p78 = scmp.ne.s32.totalorder %s66, %s67
    %p79 = scmp.eq.s32.totalorder %s15, 1
    %p80 = por %p78, %p79
    %p82 = scmp.ne.s32.totalorder %s67, %s81
    %p83 = scmp.eq.s32.totalorder %s15, 0
    %p84 = por %p82, %p83
    %s85 = ssub.s32 %s9, %s16
    %p86 = scmp.eq.s32.totalorder %s85, 0
    %s88 = sadd.s32 %s87, 1
    %s89 = scalar_select %p86, %s87, %s88
    %p92 = pneg %p86
    %p93 = scmp.eq.s32.totalorder %s9, 1
    %p94 = por %p92, %p93
    %p95 = scmp.ne.s32.totalorder %s87, %s90
    %p96 = scmp.eq.s32.totalorder %s9, 0
    %p97 = por %p95, %p96
    %p98 = scmp.ne.s32.totalorder %s87, %s90
    %p99 = scmp.eq.s32.totalorder %s14, 1
    %p100 = por %p98, %p99
    %p101 = scmp.ne.s32.totalorder %s90, %s91
    %p102 = scmp.eq.s32.totalorder %s14, 0
    %p103 = por %p101, %p102
    %p104 = scmp.ne.s32.totalorder %s90, %s91
    %p105 = scmp.eq.s32.totalorder %s15, 1
    %p106 = por %p104, %p105
    %p108 = scmp.ne.s32.totalorder %s91, %s107
    %p109 = scmp.eq.s32.totalorder %s15, 0
    %p110 = por %p108, %p109
    %p111 = scmp.le.s32.totalorder 1, %s9
    %p112 = scmp.lt.s32.totalorder %s9, 3
    %p113 = pnand %p111, %p112
    %p114 = pneg %p113
    // Predicated region
    $region9: #{down_single_conv.3} parent=5 // pred_check
      _
    $region10: #{down_single_conv.3} parent=5 // pred_check_branch
      %116 = sbr.rel (%p113) target = $region12
    $region11: #{down_single_conv.3} parent=5 // pred_region
      %s117 = ssub.s32 %s9, 1
      // Predicated region
      $region13: #{down_single_conv.3} parent=11 // pred_check
        %p118 = pneg %p56
      $region14: #{down_single_conv.3} parent=11 // pred_check_branch
        %120 = sbr.rel (%p118) target = $region16
      $region15: #{down_single_conv.3} parent=11 // pred_region
        _
      $region16: #{down_single_conv.3} parent=11 // pred_fallthru
        _
      // Predicated region
      $region17: #{down_single_conv.3} parent=11 // pred_check
        %p121 = pneg %p77
      $region18: #{down_single_conv.3} parent=11 // pred_check_branch
        %123 = sbr.rel (%p121) target = $region20
      $region19: #{down_single_conv.3} parent=11 // pred_region
        _
      $region20: #{down_single_conv.3} parent=11 // pred_fallthru
        _
    $region12: #{down_single_conv.3} parent=5 // pred_fallthru
      _
    %p124 = scmp.lt.s32.totalorder %s9, 2
    // Predicated region
    $region21: #{down_single_conv.3} parent=5 // pred_check
      %p125 = pneg %p124
    $region22: #{down_single_conv.3} parent=5 // pred_check_branch
      %127 = sbr.rel (%p125) target = $region24
    $region23: #{down_single_conv.3} parent=5 // pred_region
      // Predicated region
      $region25: #{down_single_conv.3} parent=23 // pred_check
        %p128 = pneg %p29
      $region26: #{down_single_conv.3} parent=23 // pred_check_branch
        %130 = sbr.rel (%p128) target = $region28
      $region27: #{down_single_conv.3} parent=23 // pred_region
        %p131 = scmp.lt.s32.totalorder %s9, 1
        %s132 = scalar_select %p131, %s9, 1
        %s133 = smul.addr %s132, 8
        %s134 = scalar_lea.vmem %s0, %s133
      $region28: #{down_single_conv.3} parent=23 // pred_fallthru
        _
    $region24: #{down_single_conv.3} parent=5 // pred_fallthru
      _
    %p135 = scmp.le.s32.totalorder 1, %s9
    %p136 = scmp.lt.s32.totalorder %s9, 3
    %p137 = pnand %p135, %p136
    %p138 = pneg %p137
    // Predicated region
    $region29: #{down_single_conv.3} parent=5 // pred_check
      _
    $region30: #{down_single_conv.3} parent=5 // pred_check_branch
      %140 = sbr.rel (%p137) target = $region32
    $region31: #{down_single_conv.3} parent=5 // pred_region
      %s141 = ssub.s32 %s9, 1
      %p142 = scmp.lt.s32.totalorder %s14, 1
      %s143 = scalar_select %p142, %s14, 1
      %s144 = smul.addr %s143, 8
      %s145 = scalar_lea.vmem %s0, %s144
      %p146 = pneg %p35
      %p147 = pneg %p32
      %p148 = pneg %p56
      %p149 = pneg %p53
      %p150 = pneg %p77
      %p151 = pneg %p74
      %p152 = pneg %p103
      %p153 = pneg %p100
      %p154 = scmp.lt.s32.totalorder %s14, 1
      %s155 = scalar_select %p154, %s14, 1
      %s156 = smul.addr %s155, 8
      %s157 = scalar_lea.vmem %s3, %s156
      %p158 = scmp.lt.s32.totalorder %s14, 1
      %s159 = scalar_select %p158, %s14, 1
      %s160 = smul.addr %s159, 8
      %s161 = scalar_lea.vmem %s0, %s160
      %p162 = scmp.lt.s32.totalorder %s14, 1
      %s163 = scalar_select %p162, %s14, 1
      %s164 = smul.addr %s163, 8
      %s165 = scalar_lea.vmem %s3, %s164
      %v166 = vld [vmem:[%s161] sm:$0xff]
      %v167 = vld [vmem:[%s1] sm:$0xff]
      %169 = vset.pattern.permute.xlu0 0
      %170 = vperm.xlu0 %169, %v167
      %v171 = vpop.permute.xlu0 %170
      %v173 = vmul.f32 %v166, %v171
      %v174 = vld [vmem:[%s2] sm:$0xff]
      %176 = vset.pattern.permute.xlu0 0
      %177 = vperm.xlu0 %176, %v174
      %v178 = vpop.permute.xlu0 %177
      %v180 = vadd.f32 %v173, %v178
      %v181 = vmax.f32 %v180, 0.0
      %vm182 = vcmask 654336
      %183 = vst.msk [vmem:[%s165] sm:$0xff] %vm182, %v181
      %p184 = scmp.lt.s32.totalorder %s14, 1
      %s185 = scalar_select %p184, %s14, 1
      %s186 = smul.addr %s185, 8
      %s187 = scalar_lea.vmem %s3, %s186
      // Predicated region
      $region33: #{down_single_conv.3} parent=31 // pred_check
        %p188 = pneg %p100
      $region34: #{down_single_conv.3} parent=31 // pred_check_branch
        %190 = sbr.rel (%p188) target = $region36
      $region35: #{down_single_conv.3} parent=31 // pred_region
        _
      $region36: #{down_single_conv.3} parent=31 // pred_fallthru
        _
    $region32: #{down_single_conv.3} parent=5 // pred_fallthru
      _
    %p191 = scmp.le.s32.totalorder 2, %s9
    // Predicated region
    $region37: #{down_single_conv.3} parent=5 // pred_check
      %p192 = pneg %p191
    $region38: #{down_single_conv.3} parent=5 // pred_check_branch
      %194 = sbr.rel (%p192) target = $region40
    $region39: #{down_single_conv.3} parent=5 // pred_region
      %s195 = ssub.s32 %s9, 2
      // Predicated region
      $region41: #{down_single_conv.3} parent=39 // pred_check
        %p196 = pneg %p106
      $region42: #{down_single_conv.3} parent=39 // pred_check_branch
        %198 = sbr.rel (%p196) target = $region44
      $region43: #{down_single_conv.3} parent=39 // pred_region
        %p199 = scmp.lt.s32.totalorder %s15, 1
        %s200 = scalar_select %p199, %s15, 1
        %s201 = smul.addr %s200, 8
        %s202 = scalar_lea.vmem %s3, %s201
      $region44: #{down_single_conv.3} parent=39 // pred_fallthru
        _
    $region40: #{down_single_conv.3} parent=5 // pred_fallthru
      _
  $region6: #{down_single_conv.3} parent=0 // loop_footer
    %s13 = sadd.s32 1, %s9
  $region7: #{down_single_conv.3} parent=0 // loop_footer_branch
    %8 = sbr.rel target = $region3
  $region8: #{down_single_conv.3} parent=0 // loop_exit
    _

// kernel: down_single_conv.2
$region0: #{down_single_conv.2}
  #allocation0 [shape = 'u32[]', space=smem, size = 0x4, offset = 0x4, fixed_abs, tag = 'smem constant byte address 0x4 - core index']
  #allocation1 [shape = 'u32[144,128]{1,0:T(1,128)}', space=vmem, size = 0x12000, scoped, tag = 'internal scratch']
  #allocation2 [shape = 'bf16[4,102]{1,0:T(4,128)(2,1)}', space=vmem, size = 0x400, scoped, tag = 'scratch operand']
  #allocation3 [shape = 'bf16[36,80]{1,0:T(8,128)(2,1)}', space=vmem, size = 0x2800, scoped, tag = 'scratch operand']
  %s0 = inlined_call_operand.vmem [shape: f32[2,4,4,102], index: 0, kind: input, shape index: {}]
  %s1 = inlined_call_operand.vmem [shape: bf16[8,36], index: 1, kind: input, shape index: {}]
  %s2 = inlined_call_operand.vmem [shape: f32[1,80], index: 2, kind: input, shape index: {}]
  %s3 = inlined_call_operand.vmem [shape: f32[2,8,80], index: 3, kind: output, shape index: {0}]
  %s4 = inlined_call_operand.vmem [shape: f32[2,8,1], index: 4, kind: output, shape index: {1}]
  %s5 = inlined_call_operand.vmem [shape: f32[2,8,1], index: 5, kind: output, shape index: {2}]
  %6 = xla_tuple %s3, %s4, %s5
  %s7 = sld [smem:[#allocation0]]
  $region61: #{down_single_conv.2} parent=0
    _
  %s9 = ssub.s32 1, %s7
  %s10 = scalar_select 0, %s9, %s7
  loop: start=0, step=1, limit=4
  $region2: #{down_single_conv.2} parent=0 // loop_pre_header
    _
  $region3: #{down_single_conv.2} parent=0 // loop_header
    %s12 = sphi 0, %s16
    %p13 = scmp.ge.s32.totalorder %s12, 4
    %s22 = sphi 0, %s24
    %s25 = sphi 0, %s22
    %s26 = sphi 0, %s25
    %s42 = sphi 0, %s26
    %s46 = sphi 0, %s46
    %s48 = sphi 0, %s46
    %s49 = sphi 0, %s48
    %s63 = sphi 0, %s49
    %s67 = sphi 0, %s67
    %s69 = sphi 0, %s67
    %s70 = sphi 0, %s69
    %s84 = sphi 0, %s70
    %s90 = sphi 0, %s92
    %s93 = sphi 0, %s90
    %s94 = sphi 0, %s93
    %s110 = sphi 0, %s94
    %s116 = sphi 0, %s118
    %s119 = sphi 0, %s116
    %s120 = sphi 0, %s119
    %s136 = sphi 0, %s120
    %s142 = sphi 0, %s144
    %s145 = sphi 0, %s142
    %s146 = sphi 0, %s145
    %s162 = sphi 0, %s146
  $region4: #{down_single_conv.2} parent=0 // loop_header_branch
    %15 = sbr.rel (%p13) target = $region8
  $region5: #{down_single_conv.2} parent=0 // loop_body
    %s17 = ssub.s32 %s12, 1
    %s18 = ssub.s32 %s12, 2
    %s19 = sadd.s32 %s12, 1
    %s20 = ssub.s32 %s12, %s19
    %p21 = scmp.eq.s32.totalorder %s20, 0
    %s23 = sadd.s32 %s22, 1
    %s24 = scalar_select %p21, %s22, %s23
    %p27 = pneg %p21
    %p28 = scmp.eq.s32.totalorder %s12, 1
    %p29 = por %p27, %p28
    %p30 = scmp.ne.s32.totalorder %s22, %s25
    %p31 = scmp.eq.s32.totalorder %s12, 0
    %p32 = por %p30, %p31
    %p33 = scmp.ne.s32.totalorder %s22, %s25
    %p34 = scmp.eq.s32.totalorder %s17, 1
    %p35 = por %p33, %p34
    %p36 = scmp.ne.s32.totalorder %s25, %s26
    %p37 = scmp.eq.s32.totalorder %s17, 0
    %p38 = por %p36, %p37
    %p39 = scmp.ne.s32.totalorder %s25, %s26
    %p40 = scmp.eq.s32.totalorder %s18, 1
    %p41 = por %p39, %p40
    %p43 = scmp.ne.s32.totalorder %s26, %s42
    %p44 = scmp.eq.s32.totalorder %s18, 0
    %p45 = por %p43, %p44
    %s47 = sadd.s32 %s46, 1
    %p50 = scmp.eq.s32.totalorder %s12, 1
    %p51 = scmp.ne.s32.totalorder %s46, %s48
    %p52 = scmp.eq.s32.totalorder %s12, 0
    %p53 = por %p51, %p52
    %p54 = scmp.ne.s32.totalorder %s46, %s48
    %p55 = scmp.eq.s32.totalorder %s17, 1
    %p56 = por %p54, %p55
    %p57 = scmp.ne.s32.totalorder %s48, %s49
    %p58 = scmp.eq.s32.totalorder %s17, 0
    %p59 = por %p57, %p58
    %p60 = scmp.ne.s32.totalorder %s48, %s49
    %p61 = scmp.eq.s32.totalorder %s18, 1
    %p62 = por %p60, %p61
    %p64 = scmp.ne.s32.totalorder %s49, %s63
    %p65 = scmp.eq.s32.totalorder %s18, 0
    %p66 = por %p64, %p65
    %s68 = sadd.s32 %s67, 1
    %p71 = scmp.eq.s32.totalorder %s12, 1
    %p72 = scmp.ne.s32.totalorder %s67, %s69
    %p73 = scmp.eq.s32.totalorder %s12, 0
    %p74 = por %p72, %p73
    %p75 = scmp.ne.s32.totalorder %s67, %s69
    %p76 = scmp.eq.s32.totalorder %s17, 1
    %p77 = por %p75, %p76
    %p78 = scmp.ne.s32.totalorder %s69, %s70
    %p79 = scmp.eq.s32.totalorder %s17, 0
    %p80 = por %p78, %p79
    %p81 = scmp.ne.s32.totalorder %s69, %s70
    %p82 = scmp.eq.s32.totalorder %s18, 1
    %p83 = por %p81, %p82
    %p85 = scmp.ne.s32.totalorder %s70, %s84
    %p86 = scmp.eq.s32.totalorder %s18, 0
    %p87 = por %p85, %p86
    %s88 = ssub.s32 %s12, %s19
    %p89 = scmp.eq.s32.totalorder %s88, 0
    %s91 = sadd.s32 %s90, 1
    %s92 = scalar_select %p89, %s90, %s91
    %p95 = pneg %p89
    %p96 = scmp.eq.s32.totalorder %s12, 1
    %p97 = por %p95, %p96
    %p98 = scmp.ne.s32.totalorder %s90, %s93
    %p99 = scmp.eq.s32.totalorder %s12, 0
    %p100 = por %p98, %p99
    %p101 = scmp.ne.s32.totalorder %s90, %s93
    %p102 = scmp.eq.s32.totalorder %s17, 1
    %p103 = por %p101, %p102
    %p104 = scmp.ne.s32.totalorder %s93, %s94
    %p105 = scmp.eq.s32.totalorder %s17, 0
    %p106 = por %p104, %p105
    %p107 = scmp.ne.s32.totalorder %s93, %s94
    %p108 = scmp.eq.s32.totalorder %s18, 1
    %p109 = por %p107, %p108
    %p111 = scmp.ne.s32.totalorder %s94, %s110
    %p112 = scmp.eq.s32.totalorder %s18, 0
    %p113 = por %p111, %p112
    %s114 = ssub.s32 %s12, %s19
    %p115 = scmp.eq.s32.totalorder %s114, 0
    %s117 = sadd.s32 %s116, 1
    %s118 = scalar_select %p115, %s116, %s117
    %p121 = pneg %p115
    %p122 = scmp.eq.s32.totalorder %s12, 1
    %p123 = por %p121, %p122
    %p124 = scmp.ne.s32.totalorder %s116, %s119
    %p125 = scmp.eq.s32.totalorder %s12, 0
    %p126 = por %p124, %p125
    %p127 = scmp.ne.s32.totalorder %s116, %s119
    %p128 = scmp.eq.s32.totalorder %s17, 1
    %p129 = por %p127, %p128
    %p130 = scmp.ne.s32.totalorder %s119, %s120
    %p131 = scmp.eq.s32.totalorder %s17, 0
    %p132 = por %p130, %p131
    %p133 = scmp.ne.s32.totalorder %s119, %s120
    %p134 = scmp.eq.s32.totalorder %s18, 1
    %p135 = por %p133, %p134
    %p137 = scmp.ne.s32.totalorder %s120, %s136
    %p138 = scmp.eq.s32.totalorder %s18, 0
    %p139 = por %p137, %p138
    %s140 = ssub.s32 %s12, %s19
    %p141 = scmp.eq.s32.totalorder %s140, 0
    %s143 = sadd.s32 %s142, 1
    %s144 = scalar_select %p141, %s142, %s143
    %p147 = pneg %p141
    %p148 = scmp.eq.s32.totalorder %s12, 1
    %p149 = por %p147, %p148
    %p150 = scmp.ne.s32.totalorder %s142, %s145
    %p151 = scmp.eq.s32.totalorder %s12, 0
    %p152 = por %p150, %p151
    %p153 = scmp.ne.s32.totalorder %s142, %s145
    %p154 = scmp.eq.s32.totalorder %s17, 1
    %p155 = por %p153, %p154
    %p156 = scmp.ne.s32.totalorder %s145, %s146
    %p157 = scmp.eq.s32.totalorder %s17, 0
    %p158 = por %p156, %p157
    %p159 = scmp.ne.s32.totalorder %s145, %s146
    %p160 = scmp.eq.s32.totalorder %s18, 1
    %p161 = por %p159, %p160
    %p163 = scmp.ne.s32.totalorder %s146, %s162
    %p164 = scmp.eq.s32.totalorder %s18, 0
    %p165 = por %p163, %p164
    %p166 = scmp.le.s32.totalorder 1, %s12
    %p167 = scmp.lt.s32.totalorder %s12, 3
    %p168 = pnand %p166, %p167
    %p169 = pneg %p168
    // Predicated region
    $region9: #{down_single_conv.2} parent=5 // pred_check
      _
    $region10: #{down_single_conv.2} parent=5 // pred_check_branch
      %171 = sbr.rel (%p168) target = $region12
    $region11: #{down_single_conv.2} parent=5 // pred_region
      %s172 = ssub.s32 %s12, 1
      // Predicated region
      $region13: #{down_single_conv.2} parent=11 // pred_check
        %p173 = pneg %p59
      $region14: #{down_single_conv.2} parent=11 // pred_check_branch
        %175 = sbr.rel (%p173) target = $region16
      $region15: #{down_single_conv.2} parent=11 // pred_region
        _
      $region16: #{down_single_conv.2} parent=11 // pred_fallthru
        _
      // Predicated region
      $region17: #{down_single_conv.2} parent=11 // pred_check
        %p176 = pneg %p80
      $region18: #{down_single_conv.2} parent=11 // pred_check_branch
        %178 = sbr.rel (%p176) target = $region20
      $region19: #{down_single_conv.2} parent=11 // pred_region
        _
      $region20: #{down_single_conv.2} parent=11 // pred_fallthru
        _
    $region12: #{down_single_conv.2} parent=5 // pred_fallthru
      _
    %p179 = scmp.lt.s32.totalorder %s12, 2
    // Predicated region
    $region21: #{down_single_conv.2} parent=5 // pred_check
      %p180 = pneg %p179
    $region22: #{down_single_conv.2} parent=5 // pred_check_branch
      %182 = sbr.rel (%p180) target = $region24
    $region23: #{down_single_conv.2} parent=5 // pred_region
      // Predicated region
      $region25: #{down_single_conv.2} parent=23 // pred_check
        %p183 = pneg %p32
      $region26: #{down_single_conv.2} parent=23 // pred_check_branch
        %185 = sbr.rel (%p183) target = $region28
      $region27: #{down_single_conv.2} parent=23 // pred_region
        %p186 = scmp.lt.s32.totalorder %s12, 1
        %s187 = scalar_select %p186, %s12, 1
        %s188 = smul.addr %s187, 4
        %s189 = smul.addr %s188, 4
        %s190 = scalar_lea.vmem %s0, %s189
      $region28: #{down_single_conv.2} parent=23 // pred_fallthru
        _
    $region24: #{down_single_conv.2} parent=5 // pred_fallthru
      _
    %p191 = scmp.le.s32.totalorder 1, %s12
    %p192 = scmp.lt.s32.totalorder %s12, 3
    %p193 = pnand %p191, %p192
    %p194 = pneg %p193
    // Predicated region
    $region29: #{down_single_conv.2} parent=5 // pred_check
      _
    $region30: #{down_single_conv.2} parent=5 // pred_check_branch
      %196 = sbr.rel (%p193) target = $region32
    $region31: #{down_single_conv.2} parent=5 // pred_region
      %s197 = ssub.s32 %s12, 1
      %p198 = scmp.lt.s32.totalorder %s17, 1
      %s199 = scalar_select %p198, %s17, 1
      %s200 = smul.addr %s199, 4
      %s201 = smul.addr %s200, 4
      %s202 = scalar_lea.vmem %s0, %s201
      %p203 = pneg %p38
      %p204 = pneg %p35
      %p205 = pneg %p59
      %p206 = pneg %p56
      %p207 = pneg %p80
      %p208 = pneg %p77
      %p209 = pneg %p106
      %p210 = pneg %p103
      %p211 = scmp.lt.s32.totalorder %s17, 1
      %s212 = scalar_select %p211, %s17, 1
      %s213 = smul.addr %s212, 8
      %s214 = scalar_lea.vmem %s3, %s213
      %p215 = pneg %p132
      %p216 = pneg %p129
      %p217 = scmp.lt.s32.totalorder %s17, 1
      %s218 = scalar_select %p217, %s17, 1
      %s219 = smul.addr %s218, 8
      %s220 = scalar_lea.vmem %s4, %s219
      %p221 = pneg %p158
      %p222 = pneg %p155
      %p223 = scmp.lt.s32.totalorder %s17, 1
      %s224 = scalar_select %p223, %s17, 1
      %s225 = smul.addr %s224, 8
      %s226 = scalar_lea.vmem %s5, %s225
      %p227 = scmp.lt.s32.totalorder %s17, 1
      %s228 = scalar_select %p227, %s17, 1
      %s229 = smul.addr %s228, 4
      %s230 = smul.addr %s229, 4
      %s231 = scalar_lea.vmem %s0, %s230
      %p232 = scmp.lt.s32.totalorder %s17, 1
      %s233 = scalar_select %p232, %s17, 1
      %s234 = smul.addr %s233, 8
      %s235 = scalar_lea.vmem %s3, %s234
      %p236 = scmp.lt.s32.totalorder %s17, 1
      %s237 = scalar_select %p236, %s17, 1
      %s238 = smul.addr %s237, 8
      %s239 = scalar_lea.vmem %s4, %s238
      %p240 = scmp.lt.s32.totalorder %s17, 1
      %s241 = scalar_select %p240, %s17, 1
      %s242 = smul.addr %s241, 8
      %s243 = scalar_lea.vmem %s5, %s242
      %v245 = vld [vmem:[%s231] sm:$0xf]
      %v246 = vld [vmem:[%s231 + $0x4] sm:$0xf]
      %v247 = vld [vmem:[%s231 + $0x8] sm:$0xf]
      %v248 = vld [vmem:[%s231 + $0xc] sm:$0xf]
      %vm249 = vcmask 830464
      %v250 = vsel %vm249, %v245, -inf
      %v251 = vsel %vm249, %v246, -inf
      %v252 = vsel %vm249, %v247, -inf
      %v253 = vsel %vm249, %v248, -inf
      %v254 = vmax.f32 %v250, %v251
      %v255 = vmax.f32 %v252, %v253
      %v256 = vmax.f32 %v254, %v255
      %v257 = vpack.c.bf16 %v256, %v256
      %vm258 = vcmask 828416
      %259 = vst.msk [vmem:[#allocation2] sm:$0x3] %vm258, %v257
      %v260 = vld [vmem:[#allocation2] sm:$0x3]
      %vm261 = vcmask 648192
      %262 = vst.msk [vmem:[#allocation3] sm:$0x3] %vm261, %v260
      %v263 = vld [vmem:[#allocation2] sm:$0x3]
      %v265 = vcombine.low %v263, %v263
      %v267 = vunpack.c.l.s4 1983009808
      %v268 = vunpack.c.0.s8 %v267
      %v269 = vlaneseq
      %v270 = vshrl.u32 %v269, 7
      %v271 = vsub.s32 %v268, %v270
      %v272 = vrot.slane %v265, %v271
      %273 = vrot.lane.b32.xlu0 %v272, 127
      %v274 = vpop.permute.xlu0 %273
      %vm276 = vcmask 650242
      %277 = vst.msk [vmem:[#allocation3] sm:$0xc] %vm276, %v274
      %v278 = vld [vmem:[#allocation2] sm:$0x3]
      %v281 = vunpack.c.l.s4 1983009808
      %v282 = vunpack.c.0.s8 %v281
      %v283 = vlaneseq
      %v284 = vshrl.u32 %v283, 7
      %v285 = vsub.s32 %v282, %v284
      %v286 = vrot.slane %v278, %v285
      %287 = vrot.lane.b32.xlu0 %v286, 126
      %v288 = vpop.permute.xlu0 %287
      %290 = vst.msk [vmem:[#allocation3 + $0x4] sm:$0x3] %vm261, %v288
      %v291 = vld [vmem:[#allocation2] sm:$0x3]
      %v293 = vcombine.low %v291, %v291
      %v295 = vunpack.c.l.s4 1983009808
      %v296 = vunpack.c.0.s8 %v295
      %v297 = vlaneseq
      %v298 = vshrl.u32 %v297, 7
      %v299 = vsub.s32 %v296, %v298
      %v300 = vrot.slane %v293, %v299
      %301 = vrot.lane.b32.xlu0 %v300, 118
      %v302 = vpop.permute.xlu0 %301
      %304 = vst.msk [vmem:[#allocation3 + $0x4] sm:$0xc] %vm276, %v302
      %v305 = vld [vmem:[#allocation2] sm:$0x3]
      %v308 = vunpack.c.l.s4 1983009808
      %v309 = vunpack.c.0.s8 %v308
      %v310 = vlaneseq
      %v311 = vshrl.u32 %v310, 7
      %v312 = vsub.s32 %v309, %v311
      %v313 = vrot.slane %v305, %v312
      %314 = vrot.lane.b32.xlu0 %v313, 117
      %v315 = vpop.permute.xlu0 %314
      %317 = vst.msk [vmem:[#allocation3 + $0x8] sm:$0x3] %vm261, %v315
      %v318 = vld [vmem:[#allocation2] sm:$0x3]
      %v320 = vcombine.low %v318, %v318
      %v322 = vunpack.c.l.s4 1983009808
      %v323 = vunpack.c.0.s8 %v322
      %v324 = vlaneseq
      %v325 = vshrl.u32 %v324, 7
      %v326 = vsub.s32 %v323, %v325
      %v327 = vrot.slane %v320, %v326
      %328 = vrot.lane.b32.xlu0 %v327, 116
      %v329 = vpop.permute.xlu0 %328
      %331 = vst.msk [vmem:[#allocation3 + $0x8] sm:$0xc] %vm276, %v329
      %v332 = vld [vmem:[#allocation2] sm:$0x3]
      %v335 = vunpack.c.l.s4 1983009808
      %v336 = vunpack.c.0.s8 %v335
      %v337 = vlaneseq
      %v338 = vshrl.u32 %v337, 7
      %v339 = vsub.s32 %v336, %v338
      %v340 = vrot.slane %v332, %v339
      %341 = vrot.lane.b32.xlu0 %v340, 108
      %v342 = vpop.permute.xlu0 %341
      %344 = vst.msk [vmem:[#allocation3 + $0xc] sm:$0x3] %vm261, %v342
      %v345 = vld [vmem:[#allocation2] sm:$0x3]
      %v347 = vcombine.low %v345, %v345
      %v349 = vunpack.c.l.s4 1983009808
      %v350 = vunpack.c.0.s8 %v349
      %v351 = vlaneseq
      %v352 = vshrl.u32 %v351, 7
      %v353 = vsub.s32 %v350, %v352
      %v354 = vrot.slane %v347, %v353
      %355 = vrot.lane.b32.xlu0 %v354, 107
      %v356 = vpop.permute.xlu0 %355
      %358 = vst.msk [vmem:[#allocation3 + $0xc] sm:$0xc] %vm276, %v356
      %v359 = vld [vmem:[#allocation2] sm:$0x3]
      %v362 = vunpack.c.l.s4 1983009808
      %v363 = vunpack.c.0.s8 %v362
      %v364 = vlaneseq
      %v365 = vshrl.u32 %v364, 7
      %v366 = vsub.s32 %v363, %v365
      %v367 = vrot.slane %v359, %v366
      %368 = vrot.lane.b32.xlu0 %v367, 106
      %v369 = vpop.permute.xlu0 %368
      %371 = vst.msk [vmem:[#allocation3 + $0x10] sm:$0x3] %vm261, %v369
      %v372 = vld [vmem:[%s1] sm:$0xf]
      %v373 = vld [vmem:[#allocation3] sm:$0xf]
      %v374 = vld [vmem:[#allocation3 + $0x4] sm:$0xf]
      %v375 = vld [vmem:[#allocation3 + $0x8] sm:$0xf]
      %v376 = vld [vmem:[#allocation3 + $0xc] sm:$0xf]
      %v377 = vld [vmem:[#allocation3 + $0x10] sm:$0x3]
      %v383 = vunpack.c.l.b16 %v373
      %v384 = vunpack.c.l.b16 %v374
      %v385 = vunpack.c.l.b16 %v375
      %v386 = vunpack.c.l.b16 %v376
      %v387 = vunpack.c.l.b16 %v377
      %v388 = vpack.c.b16 %v384, %v383
      %v389 = vpack.c.b16 %v386, %v385
      %v390 = vpack.c.b16 %v387, %v387
      %vm393 = vcmask 293888
      %v395 = vsel %vm393, %v372, 0
      %vm397 = vcmask 1041408
      %v399 = vsel %vm397, %v390, 0
      %401 = vmatprep.subr.bf16.mxu0 0
      %402 = vmatpush1.bf16.msra.mxu0 %v388
      %403 = vmatprep.subr.bf16.mxu0 0
      %404 = vmatpush1.bf16.msra.mxu0 %v389
      %405 = vmatprep.subr.bf16.mxu0 0
      %406 = vmatpush1.bf16.msra.mxu0 %v399
      %407 = vmatprep.subr.bf16.mxu0 0
      %408 = vmatpush1.bf16.msra.mxu0 0
      %409 = vmatprep.subr.bf16.mxu0 0
      %410 = vmatpush1.bf16.msra.mxu0 0
      %411 = vmatprep.subr.bf16.mxu0 0
      %412 = vmatpush1.bf16.msra.mxu0 0
      %413 = vmatprep.subr.bf16.mxu0 0
      %414 = vmatpush1.bf16.msra.mxu0 0
      %415 = vmatprep.subr.bf16.mxu0 0
      %416 = vmatpush1.bf16.msra.mxu0 0
      %417 = vmatprep.subr.bf16.mxu0 0
      %418 = vmatpush1.bf16.msra.mxu0 0
      %419 = vmatprep.subr.bf16.mxu0 0
      %420 = vmatpush1.bf16.msra.mxu0 0
      %421 = vmatprep.subr.bf16.mxu0 0
      %422 = vmatpush1.bf16.msra.mxu0 0
      %423 = vmatprep.subr.bf16.mxu0 0
      %424 = vmatpush1.bf16.msra.mxu0 0
      %425 = vmatprep.subr.bf16.mxu0 0
      %426 = vmatpush1.bf16.msra.mxu0 0
      %427 = vmatprep.subr.bf16.mxu0 0
      %428 = vmatpush1.bf16.msra.mxu0 0
      %429 = vmatprep.subr.bf16.mxu0 0
      %430 = vmatpush1.bf16.msra.mxu0 0
      %431 = vmatprep.subr.bf16.mxu0 0
      %432 = vmatpush1.bf16.msra.mxu0 0
      %433 = vmatprep.mubr.bf16.mxu0 0
      %434 = vmatmul.mubr.bf16.gmra.mrb[0].mxu0 %v395
      %v435 = vpop.f32.mrb[0].mxu0
      %v436 = vadd.f32 0.0, %v435
      %v437 = vpop.f32.mrb[0].mxu0
      %v438 = vpop.f32.mrb[0].mxu0
      %v439 = vpop.f32.mrb[0].mxu0
      %440 = vdwg.mxu0
      %vm441 = vcmask 654336
      %442 = vst.msk [vmem:[%s235] sm:$0xff] %vm441, %v436
      %v443 = vld [vmem:[%s2] sm:$0x1]
      %v445 = vlaneseq
      %v446 = vshrl.u32 %v445, 7
      %v447 = vsub.s32 0, %v446
      %v448 = vrot.slane %v443, %v447
      %v450 = vmul.f32 %v436, %v448
      %v451 = vsel %vm441, %v450, 0.0
      %452 = vadd.xlane.f32.xlu0 %v451
      %v453 = vpop.xlane.xlu0 %452
      %vm454 = vcmask 7168
      %455 = vst.msk [vmem:[%s239] sm:$0xff] %vm454, %v453
      %v456 = vmul.f32 %v450, %v436
      %v457 = vsel %vm441, %v456, 0.0
      %458 = vadd.xlane.f32.xlu0 %v457
      %v459 = vpop.xlane.xlu0 %458
      %460 = vst.msk [vmem:[%s243] sm:$0xff] %vm454, %v459
      %p461 = scmp.lt.s32.totalorder %s17, 1
      %s462 = scalar_select %p461, %s17, 1
      %s463 = smul.addr %s462, 8
      %s464 = scalar_lea.vmem %s3, %s463
      %p465 = scmp.lt.s32.totalorder %s17, 1
      %s466 = scalar_select %p465, %s17, 1
      %s467 = smul.addr %s466, 8
      %s468 = scalar_lea.vmem %s4, %s467
      %p469 = scmp.lt.s32.totalorder %s17, 1
      %s470 = scalar_select %p469, %s17, 1
      %s471 = smul.addr %s470, 8
      %s472 = scalar_lea.vmem %s5, %s471
      // Predicated region
      $region33: #{down_single_conv.2} parent=31 // pred_check
        %p473 = pneg %p103
      $region34: #{down_single_conv.2} parent=31 // pred_check_branch
        %475 = sbr.rel (%p473) target = $region36
      $region35: #{down_single_conv.2} parent=31 // pred_region
        _
      $region36: #{down_single_conv.2} parent=31 // pred_fallthru
        _
      // Predicated region
      $region37: #{down_single_conv.2} parent=31 // pred_check
        %p476 = pneg %p129
      $region38: #{down_single_conv.2} parent=31 // pred_check_branch
        %478 = sbr.rel (%p476) target = $region40
      $region39: #{down_single_conv.2} parent=31 // pred_region
        _
      $region40: #{down_single_conv.2} parent=31 // pred_fallthru
        _
      // Predicated region
      $region41: #{down_single_conv.2} parent=31 // pred_check
        %p479 = pneg %p155
      $region42: #{down_single_conv.2} parent=31 // pred_check_branch
        %481 = sbr.rel (%p479) target = $region44
      $region43: #{down_single_conv.2} parent=31 // pred_region
        _
      $region44: #{down_single_conv.2} parent=31 // pred_fallthru
        _
    $region32: #{down_single_conv.2} parent=5 // pred_fallthru
      _
    %p482 = scmp.le.s32.totalorder 2, %s12
    // Predicated region
    $region45: #{down_single_conv.2} parent=5 // pred_check
      %p483 = pneg %p482
    $region46: #{down_single_conv.2} parent=5 // pred_check_branch
      %485 = sbr.rel (%p483) target = $region48
    $region47: #{down_single_conv.2} parent=5 // pred_region
      %s486 = ssub.s32 %s12, 2
      // Predicated region
      $region49: #{down_single_conv.2} parent=47 // pred_check
        %p487 = pneg %p109
      $region50: #{down_single_conv.2} parent=47 // pred_check_branch
        %489 = sbr.rel (%p487) target = $region52
      $region51: #{down_single_conv.2} parent=47 // pred_region
        %p490 = scmp.lt.s32.totalorder %s18, 1
        %s491 = scalar_select %p490, %s18, 1
        %s492 = smul.addr %s491, 8
        %s493 = scalar_lea.vmem %s3, %s492
      $region52: #{down_single_conv.2} parent=47 // pred_fallthru
        _
      // Predicated region
      $region53: #{down_single_conv.2} parent=47 // pred_check
        %p494 = pneg %p135
      $region54: #{down_single_conv.2} parent=47 // pred_check_branch
        %496 = sbr.rel (%p494) target = $region56
      $region55: #{down_single_conv.2} parent=47 // pred_region
        %p497 = scmp.lt.s32.totalorder %s18, 1
        %s498 = scalar_select %p497, %s18, 1
        %s499 = smul.addr %s498, 8
        %s500 = scalar_lea.vmem %s4, %s499
      $region56: #{down_single_conv.2} parent=47 // pred_fallthru
        _
      // Predicated region
      $region57: #{down_single_conv.2} parent=47 // pred_check
        %p501 = pneg %p161
      $region58: #{down_single_conv.2} parent=47 // pred_check_branch
        %503 = sbr.rel (%p501) target = $region60
      $region59: #{down_single_conv.2} parent=47 // pred_region
        %p504 = scmp.lt.s32.totalorder %s18, 1
        %s505 = scalar_select %p504, %s18, 1
        %s506 = smul.addr %s505, 8
        %s507 = scalar_lea.vmem %s5, %s506
      $region60: #{down_single_conv.2} parent=47 // pred_fallthru
        _
    $region48: #{down_single_conv.2} parent=5 // pred_fallthru
      _
  $region6: #{down_single_conv.2} parent=0 // loop_footer
    %s16 = sadd.s32 1, %s12
  $region7: #{down_single_conv.2} parent=0 // loop_footer_branch
    %11 = sbr.rel target = $region3
  $region8: #{down_single_conv.2} parent=0 // loop_exit
    _

</llo_original>
